<compile_context>
chip_gen: v6e
topology: v6e:2x2x1
jax: 0.10.0
libtpu: 0.0.40
codegen_flags: <defaults>
</compile_context>

<pallas_src>
import jax
import jax.numpy as jnp
from jax.experimental import pallas as pl
from jax.experimental.pallas import tpu as pltpu


def _replicated_group_sum(x, group_width: int, num_groups: int):
    """x: (R, num_groups * group_width).

    Returns y with y[:, j] = sum_k x[:, (j % group_width) + k * group_width],
    i.e. the per-(row, feature) sum over the num_groups time positions, already
    replicated at every time position (cyclic rolls make the broadcast free).

    Generalized log-tree via binary decomposition of num_groups:
    ~floor(log2(G)) + popcount(G) - 1 full-tile rolls instead of G - 1.
    Identity used: S_{a+b} = S_a + roll(S_b, a * group_width), with
    S_k := sum_{m<k} roll(x, m * group_width).
    """
    if num_groups <= 1:
        return x
    acc = None          # S_{acc_len}
    acc_len = 0
    base = x            # S_{count}, count = 2**i
    count = 1
    g = num_groups
    while g:
        if g & 1:
            if acc is None:
                acc, acc_len = base, count
            else:
                acc = acc + pltpu.roll(base, shift=acc_len * group_width, axis=1)
                acc_len += count
        g >>= 1
        if g:
            base = base + pltpu.roll(base, shift=count * group_width, axis=1)
            count *= 2
    return acc


def _make_kernel(seq_len: int, feat: int):
    def kernel(lens_ref, seq_ref, out_ref):
        # lens_ref: (TB, 1) int32; seq_ref / out_ref: (TB, S*D) float (lane-dense).
        x = seq_ref[...].astype(jnp.float32)
        lens = lens_ref[...]                                       # (TB, 1)

        lane = jax.lax.broadcasted_iota(jnp.int32, x.shape, 1)     # flat s*D + d index
        valid = lane < lens * feat                                 # <=> time index < L

        n = lens.astype(jnp.float32)                               # (TB, 1)
        inv_n = 1.0 / n
        inv_nm1 = 1.0 / (n - 1.0)                                  # sample variance (L - 1)

        # Seed the roll trees directly with the masked values (no extra
        # materialized xm/sq temporaries beyond what the tree needs).
        mean = _replicated_group_sum(jnp.where(valid, x, 0.0), feat, seq_len) * inv_n
        centered = x - mean                                        # whole sequence (incl. pad)
        var = _replicated_group_sum(
            jnp.where(valid, centered * centered, 0.0), feat, seq_len) * inv_nm1

        # (x - mean) / std == centered * rsqrt(var); rsqrt runs on the EUP slot.
        out_ref[...] = (centered * jax.lax.rsqrt(var)).astype(out_ref.dtype)

    return kernel


def _vmem_and_cores():
    """Returns (vmem_limit_bytes, is_dual_tensorcore_chip)."""
    kind = ""
    try:
        kind = str(jax.devices()[0].device_kind)
    except Exception:
        pass
    two_tc = "7" in kind          # v7x: 2 TensorCores/chip, 64 MiB VMEM per TC
    if two_tc:
        return 48 * 1024 * 1024, True
    cap = None
    try:
        cap = int(pltpu.get_tpu_info().vmem_capacity_bytes)
    except Exception:
        cap = None
    if not cap:
        cap = 128 * 1024 * 1024   # v5e / v6e
    return min(3 * cap // 4, 96 * 1024 * 1024), False


def _plan_batch_blocks(batch: int, tb_target: int, two_tc: bool):
    """Pick rows-per-step `tb` and padded batch `b_pad` (== batch whenever possible).

    Sublane rule: a block dim must be a multiple of 8 or equal the full array
    dim, so tb is always a multiple of 8 or `batch` itself.
    """
    tb_target = max(8, tb_target)
    if batch <= tb_target:
        # Whole batch in one step; on dual-TC chips split into two equal steps
        # only when that costs no padding.
        if two_tc and batch >= 16 and batch % 16 == 0:
            return batch // 2, batch
        return batch, batch
    # Prefer an exact multiple-of-8 divisor of batch -> zero padding.
    divisors = [d for d in range(8, tb_target + 1, 8) if batch % d == 0]
    if divisors:
        if two_tc:
            even = [d for d in divisors if (batch // d) % 2 == 0]
            if even:
                return max(even), batch
        return max(divisors), batch
    # Rare fallback: minimal padding (< 8 garbage rows per grid step).
    n_steps = -(-batch // tb_target)
    if two_tc and n_steps % 2:
        n_steps += 1
    tb = ((-(-batch // n_steps) + 7) // 8) * 8
    return tb, n_steps * tb


def sequence_standardizer(sequence: jax.Array, lengths: jax.Array) -> jax.Array:
    """sequence: (B, S, D) float, lengths: (B,) int -> (B, S, D) standardized per
    (batch, feature) over the first lengths[b] timesteps (sample std, N-1)."""
    B, S, D = sequence.shape
    row = S * D
    lengths = lengths.astype(jnp.int32)

    io_row_bytes = jnp.dtype(sequence.dtype).itemsize * row
    f32_row_bytes = 4 * row

    vmem_limit, two_tc = _vmem_and_cores()
    # Per-row VMEM cost: 2 double-buffered input blocks + 2 output blocks plus
    # ~8 full-tile f32 temporaries (x, iota/mask, roll-tree accumulators,
    # centered, var, rsqrt).  Use ~2/3 of the scoped limit, leave headroom.
    cost_per_row = 4 * io_row_bytes + 8 * f32_row_bytes
    tb_target = max(8, (2 * vmem_limit // 3) // cost_per_row)
    # Per measured data, tiles plateau near the HBM roofline well below 2 MiB.
    tb_target = min(tb_target, max(8, (2 << 20) // io_row_bytes))

    tb, b_pad = _plan_batch_blocks(B, tb_target, two_tc)

    seq_flat = sequence.reshape(B, row)               # free: contiguous reshape
    lens2 = lengths.reshape(B, 1)
    if b_pad != B:
        # Rare fallback only; padded rows (zeros, length forced to 2) yield NaN
        # in the padded region, which is sliced off below.
        seq_flat = jnp.pad(seq_flat, ((0, b_pad - B), (0, 0)))
        lens2 = jnp.pad(lens2, ((0, b_pad - B), (0, 0)), constant_values=2)

    out_flat = pl.pallas_call(
        _make_kernel(S, D),
        out_shape=jax.ShapeDtypeStruct((b_pad, row), sequence.dtype),
        grid_spec=pltpu.PrefetchScalarGridSpec(
            num_scalar_prefetch=0,
            grid=(b_pad // tb,),
            in_specs=[
                pl.BlockSpec((tb, 1), lambda g: (g, 0)),     # lengths
                pl.BlockSpec((tb, row), lambda g: (g, 0)),   # sequence (lane-dense)
            ],
            out_specs=pl.BlockSpec((tb, row), lambda g: (g, 0)),
        ),
        compiler_params=pltpu.CompilerParams(
            dimension_semantics=("parallel",),
            vmem_limit_bytes=vmem_limit,
        ),
    )(lens2, seq_flat)

    if b_pad != B:
        out_flat = out_flat[:B]
    return out_flat.reshape(B, S, D)


def _reference(sequence, lengths):
    # Pure-JAX reference replicating the PyTorch loop semantics.
    B, S, D = sequence.shape
    outs = []
    for b in range(B):
        L = int(lengths[b])
        valid = sequence[b, :L]
        mean = valid.sum(0) / L
        var = ((valid - mean) ** 2).sum(0) / (L - 1)
        std = jnp.sqrt(var)
        outs.append((sequence[b] - mean) / std)
    return jnp.stack(outs, 0)


if __name__ == "__main__":
    key = jax.random.PRNGKey(0)
    k1, k2 = jax.random.split(key)

    # Primary case: B=2, S=8, D=32 (input_size = 32).
    B, S, D = 2, 8, 32
    sequence = jax.random.normal(k1, (B, S, D), dtype=jnp.float32)
    lengths = jnp.array([8, 5], dtype=jnp.int32)
    out = jax.block_until_ready(sequence_standardizer(sequence, lengths))
    ref = _reference(sequence, lengths)
    assert out.shape == (B, S, D)
    assert jnp.allclose(out, ref, atol=1e-5, rtol=1e-5)

    # Non-power-of-two sequence length + odd batch: exercises the generalized
    # log-tree reduction and the no-padding single-block path.
    B2, S2, D2 = 3, 6, 64
    seq2 = jax.random.normal(k2, (B2, S2, D2), dtype=jnp.float32)
    len2 = jnp.array([6, 4, 3], dtype=jnp.int32)
    out2 = jax.block_until_ready(sequence_standardizer(seq2, len2))
    ref2 = _reference(seq2, len2)
    assert jnp.allclose(out2, ref2, atol=1e-5, rtol=1e-5)

    print("KERNEL_OK")
</pallas_src>

<mosaic_0001>
module attributes {stable_mosaic.version = 11 : i64} {
  func.func @kernel(%arg0: i32, %arg1: memref<2x1xi32, #tpu.memory_space<vmem>>, %arg2: memref<2x256xf32, #tpu.memory_space<vmem>>, %arg3: memref<2x256xf32, #tpu.memory_space<vmem>>) attributes {dimension_semantics = [#tpu.dimension_semantics<parallel>], iteration_bounds = array<i64: 1>, scalar_prefetch = 0 : i64, scratch_operands = 0 : i64, tpu.core_type = #tpu.core_type<tc>, window_params = [{transform_indices = @transform_0, window_bounds = array<i64: 2, 1>}, {transform_indices = @transform_1, window_bounds = array<i64: 2, 256>}, {transform_indices = @transform_2, window_bounds = array<i64: 2, 256>}]} {
    %c0 = arith.constant 0 : index
    %c0_0 = arith.constant 0 : index
    %0 = vector.load %arg2[%c0, %c0_0] : memref<2x256xf32, #tpu.memory_space<vmem>>, vector<2x256xf32>
    %c0_1 = arith.constant 0 : index
    %c0_2 = arith.constant 0 : index
    %1 = vector.load %arg1[%c0_1, %c0_2] : memref<2x1xi32, #tpu.memory_space<vmem>>, vector<2x1xi32>
    %2 = tpu.iota {dimensions = array<i32: 1>} : vector<2x256xi32>
    %c32_i32 = arith.constant 32 : i32
    %3 = vector.broadcast %c32_i32 : i32 to vector<2x1xi32>
    %4 = arith.muli %1, %3 : vector<2x1xi32>
    %5 = vector.broadcast %4 : vector<2x1xi32> to vector<2x256xi32>
    %6 = arith.cmpi slt, %2, %5 : vector<2x256xi32>
    %7 = arith.sitofp %1 : vector<2x1xi32> to vector<2x1xf32>
    %cst = arith.constant 1.000000e+00 : f32
    %8 = vector.broadcast %cst : f32 to vector<2x1xf32>
    %9 = arith.divf %8, %7 : vector<2x1xf32>
    %cst_3 = arith.constant 1.000000e+00 : f32
    %10 = vector.broadcast %cst_3 : f32 to vector<2x1xf32>
    %11 = arith.subf %7, %10 : vector<2x1xf32>
    %cst_4 = arith.constant 1.000000e+00 : f32
    %12 = vector.broadcast %cst_4 : f32 to vector<2x1xf32>
    %13 = arith.divf %12, %11 : vector<2x1xf32>
    %cst_5 = arith.constant 0.000000e+00 : f32
    %14 = vector.broadcast %cst_5 : f32 to vector<2x256xf32>
    %15 = arith.select %6, %0, %14 : vector<2x256xi1>, vector<2x256xf32>
    %c32_i32_6 = arith.constant 32 : i32
    %16 = tpu.dynamic_rotate %15 by %c32_i32_6 dim 1 : vector<2x256xf32>, i32 -> vector<2x256xf32>
    %17 = arith.addf %15, %16 : vector<2x256xf32>
    %c64_i32 = arith.constant 64 : i32
    %18 = tpu.dynamic_rotate %17 by %c64_i32 dim 1 : vector<2x256xf32>, i32 -> vector<2x256xf32>
    %19 = arith.addf %17, %18 : vector<2x256xf32>
    %c128_i32 = arith.constant 128 : i32
    %20 = tpu.dynamic_rotate %19 by %c128_i32 dim 1 : vector<2x256xf32>, i32 -> vector<2x256xf32>
    %21 = arith.addf %19, %20 : vector<2x256xf32>
    %22 = vector.broadcast %9 : vector<2x1xf32> to vector<2x256xf32>
    %23 = arith.mulf %21, %22 : vector<2x256xf32>
    %24 = arith.subf %0, %23 : vector<2x256xf32>
    %25 = arith.mulf %24, %24 : vector<2x256xf32>
    %cst_7 = arith.constant 0.000000e+00 : f32
    %26 = vector.broadcast %cst_7 : f32 to vector<2x256xf32>
    %27 = arith.select %6, %25, %26 : vector<2x256xi1>, vector<2x256xf32>
    %c32_i32_8 = arith.constant 32 : i32
    %28 = tpu.dynamic_rotate %27 by %c32_i32_8 dim 1 : vector<2x256xf32>, i32 -> vector<2x256xf32>
    %29 = arith.addf %27, %28 : vector<2x256xf32>
    %c64_i32_9 = arith.constant 64 : i32
    %30 = tpu.dynamic_rotate %29 by %c64_i32_9 dim 1 : vector<2x256xf32>, i32 -> vector<2x256xf32>
    %31 = arith.addf %29, %30 : vector<2x256xf32>
    %c128_i32_10 = arith.constant 128 : i32
    %32 = tpu.dynamic_rotate %31 by %c128_i32_10 dim 1 : vector<2x256xf32>, i32 -> vector<2x256xf32>
    %33 = arith.addf %31, %32 : vector<2x256xf32>
    %34 = vector.broadcast %13 : vector<2x1xf32> to vector<2x256xf32>
    %35 = arith.mulf %33, %34 : vector<2x256xf32>
    %36 = math.rsqrt %35 : vector<2x256xf32>
    %37 = arith.mulf %24, %36 : vector<2x256xf32>
    %c0_11 = arith.constant 0 : index
    %c0_12 = arith.constant 0 : index
    %38 = vector.load %arg3[%c0_11, %c0_12] : memref<2x256xf32, #tpu.memory_space<vmem>>, vector<2x256xf32>
    tpu.vector_store %arg3[%c0_11, %c0_12], %37 {strides = array<i32>} : memref<2x256xf32, #tpu.memory_space<vmem>>, vector<2x256xf32>,
    return
  }
  func.func @transform_0(%arg0: i32) -> (i32, i32) {
    %c0_i32 = arith.constant 0 : i32
    %c0_i32_0 = arith.constant 0 : i32
    return %arg0, %c0_i32 : i32, i32
  }
  func.func @transform_1(%arg0: i32) -> (i32, i32) {
    %c0_i32 = arith.constant 0 : i32
    %c0_i32_0 = arith.constant 0 : i32
    return %arg0, %c0_i32 : i32, i32
  }
  func.func @transform_2(%arg0: i32) -> (i32, i32) {
    %c0_i32 = arith.constant 0 : i32
    %c0_i32_0 = arith.constant 0 : i32
    return %arg0, %c0_i32 : i32, i32
  }
}

</mosaic_0001>

<llo_original>
// kernel: tpu_custom_call.1
$region0: #{tpu_custom_call.1}
  #allocation0 [shape = 'u32[]', space=smem, size = 0x4, offset = 0x4, fixed_abs, tag = 'smem constant byte address 0x4 - core index']
  #allocation1 [shape = 'u32[144,128]{1,0:T(1,128)}', space=vmem, size = 0x12000, scoped, tag = 'internal scratch']
  %s0 = inlined_call_operand.vmem [shape: s32[2,1], index: 0, kind: input, shape index: {}]
  %s1 = inlined_call_operand.vmem [shape: f32[2,256], index: 1, kind: input, shape index: {}]
  %s2 = inlined_call_operand.hbm [shape: f32[2,256], index: 2, kind: output, shape index: {}]
  %s3 = sld [smem:[#allocation0]]
  $region18: #{tpu_custom_call.1} parent=0
    _
  %s5 = ssub.s32 1, %s3
  %s6 = scalar_select 0, %s5, %s3
  $region1: #{tpu_custom_call.1} parent=0
    #allocation2 [shape = 'u8[2048]{0}', space=vmem, size = 0x800, scoped, tag = 'output window, operand 0, single buffered']
    #allocation3 [shape = 's32[1]{0}', space=sflag, size = 0x4, scoped, tag = 'scoped memory for tpu_custom_call.1']
    %7 = vsyncpa [#allocation3], 0
    // Predicated region
    $region2: #{tpu_custom_call.1} parent=1 // pred_check
      _
    $region3: #{tpu_custom_call.1} parent=1 // pred_check_branch
      %9 = sbr.rel (0) target = $region5
    $region4: #{tpu_custom_call.1} parent=1 // pred_region
      _
    $region5: #{tpu_custom_call.1} parent=1 // pred_fallthru
      _
    // Predicated region
    $region6: #{tpu_custom_call.1} parent=1 // pred_check
      _
    $region7: #{tpu_custom_call.1} parent=1 // pred_check_branch
      %11 = sbr.rel (0) target = $region9
    $region8: #{tpu_custom_call.1} parent=1 // pred_region
      _
    $region9: #{tpu_custom_call.1} parent=1 // pred_fallthru
      _
    %v12 = vld [vmem:[%s1] sm:$0xf]
    %v13 = vld [vmem:[%s0] sm:$0x3]
    %v14 = vlaneseq
    %v15 = vand.u32 %v14, 127
    %v16 = vadd.s32 %v15, 128
    %v17 = vmul.u32 %v13, 32
    %18 = vset.pattern.permute.xlu0 0
    %19 = vperm.xlu0 %18, %v17
    %v20 = vpop.permute.xlu0 %19
    %vm21 = vcmp.lt.s32.totalorder %v15, %v20
    %vm22 = vcmp.lt.s32.totalorder %v16, %v20
    %v23 = vcvt.s32.f32 %v13
    %v24 = vrcp.pop %v23
    %v25 = vmul.f32 1.0, %v24
    %v26 = vsub.f32 %v23, 1.0
    %v27 = vrcp.pop %v26
    %v28 = vmul.f32 1.0, %v27
    %v31 = vunpack.c.l.s4 1983009808
    %v32 = vunpack.c.0.s8 %v31
    %v33 = vlaneseq
    %v34 = vshrl.u32 %v33, 7
    %v35 = vsub.s32 %v32, %v34
    %v36 = vrot.slane %v12, %v35
    %v37 = vcombine.high %v36, %v36
    %v40 = vsel %vm21, %v36, 0.0
    %v41 = vsel %vm22, %v37, 0.0
    %42 = vrot.lane.b32.xlu0 %v40, 32
    %v43 = vpop.permute.xlu0 %42
    %44 = vrot.lane.b32.xlu0 %v41, 32
    %v45 = vpop.permute.xlu0 %44
    %vm46 = vcmp.lt.s32.totalorder %v15, 32
    %v47 = vsel %vm46, %v43, %v45
    %v48 = vsel %vm46, %v45, %v43
    %v49 = vadd.f32 %v40, %v48
    %v50 = vadd.f32 %v41, %v47
    %51 = vrot.lane.b32.xlu0 %v49, 64
    %v52 = vpop.permute.xlu0 %51
    %53 = vrot.lane.b32.xlu0 %v50, 64
    %v54 = vpop.permute.xlu0 %53
    %vm55 = vcmp.lt.s32.totalorder %v15, 64
    %v56 = vsel %vm55, %v52, %v54
    %v57 = vsel %vm55, %v54, %v52
    %v58 = vadd.f32 %v49, %v57
    %v59 = vadd.f32 %v50, %v56
    %v60 = vadd.f32 %v58, %v59
    %62 = vset.pattern.permute.xlu0 0
    %63 = vperm.xlu0 %62, %v25
    %v64 = vpop.permute.xlu0 %63
    %v66 = vmul.f32 %v60, %v64
    %v68 = vcombine.low %v66, %v66
    %v70 = vunpack.c.l.s4 1983009808
    %v71 = vunpack.c.0.s8 %v70
    %v72 = vlaneseq
    %v73 = vshrl.u32 %v72, 7
    %v74 = vsub.s32 %v71, %v73
    %v75 = vrot.slane %v68, %v74
    %v77 = vsub.f32 %v12, %v75
    %v78 = vmul.f32 %v77, %v77
    %v81 = vunpack.c.l.s4 1983009808
    %v82 = vunpack.c.0.s8 %v81
    %v83 = vlaneseq
    %v84 = vshrl.u32 %v83, 7
    %v85 = vsub.s32 %v82, %v84
    %v86 = vrot.slane %v78, %v85
    %v87 = vcombine.high %v86, %v86
    %v90 = vsel %vm21, %v86, 0.0
    %v91 = vsel %vm22, %v87, 0.0
    %92 = vrot.lane.b32.xlu0 %v90, 32
    %v93 = vpop.permute.xlu0 %92
    %94 = vrot.lane.b32.xlu0 %v91, 32
    %v95 = vpop.permute.xlu0 %94
    %v96 = vsel %vm46, %v93, %v95
    %v97 = vsel %vm46, %v95, %v93
    %v98 = vadd.f32 %v90, %v97
    %v99 = vadd.f32 %v91, %v96
    %100 = vrot.lane.b32.xlu0 %v98, 64
    %v101 = vpop.permute.xlu0 %100
    %102 = vrot.lane.b32.xlu0 %v99, 64
    %v103 = vpop.permute.xlu0 %102
    %v104 = vsel %vm55, %v101, %v103
    %v105 = vsel %vm55, %v103, %v101
    %v106 = vadd.f32 %v98, %v105
    %v107 = vadd.f32 %v99, %v104
    %v108 = vadd.f32 %v106, %v107
    %110 = vset.pattern.permute.xlu0 0
    %111 = vperm.xlu0 %110, %v28
    %v112 = vpop.permute.xlu0 %111
    %v114 = vmul.f32 %v108, %v112
    %v115 = vrsqrt.pop %v114
    %v117 = vcombine.low %v115, %v115
    %v119 = vunpack.c.l.s4 1983009808
    %v120 = vunpack.c.0.s8 %v119
    %v121 = vlaneseq
    %v122 = vshrl.u32 %v121, 7
    %v123 = vsub.s32 %v120, %v122
    %v124 = vrot.slane %v117, %v123
    %v126 = vmul.f32 %v77, %v124
    %127 = vst [vmem:[#allocation2] sm:$0xf] %v126
    // Predicated region
    $region10: #{tpu_custom_call.1} parent=1 // pred_check
      _
    $region11: #{tpu_custom_call.1} parent=1 // pred_check_branch
      %129 = sbr.rel (0) target = $region13
    $region12: #{tpu_custom_call.1} parent=1 // pred_region
      %s131 = ssub.s32 64, 64
      %132 = vsyncadd [#allocation3], %s131
      %s134 = sshll.u32 [#allocation2], 4
      %s135 = int_to_ptr.vmem [resolvable:$true] %s134
      %137 = dma.vmem_to_hbm [thread:$0]  %s135, 64, %s2, [#allocation3]
    $region13: #{tpu_custom_call.1} parent=1 // pred_fallthru
      _
    // Predicated region
    $region14: #{tpu_custom_call.1} parent=1 // pred_check
      _
    $region15: #{tpu_custom_call.1} parent=1 // pred_check_branch
      %139 = sbr.rel (0) target = $region17
    $region16: #{tpu_custom_call.1} parent=1 // pred_region
      %140 = dma.done [#allocation3], 64
    $region17: #{tpu_custom_call.1} parent=1 // pred_fallthru
      _
    %141 = vsyncpa [#allocation3], 1

</llo_original>
